<compile_context>
chip_gen: v7x
topology: tpu7x:2x2x1
jax: 0.10.0
libtpu: 0.0.40
codegen_flags: <defaults>
</compile_context>

<pallas_src>
import functools

import jax
import jax.numpy as jnp
from jax.experimental import pallas as pl
from jax.experimental.pallas import tpu as pltpu


def _gradop_kernel(col_ref, u_ref, o_ref, *, n):
    """col_ref: (1, P) int32 column index j of each flat pixel, P = n*n.
    u_ref:   (TB, P) float, TB images flattened row-major along lanes.
    o_ref:   (2, TB, P) float, plane 0 = ux, plane 1 = uy.
    """
    x = u_ref[...]                      # (TB, P)
    col = col_ref[...]                  # (1, P)
    first_col = col == 0
    last_col = col == n - 1

    # Edge-replicated shifted copies.  Flat layout: +-1 = column shift within a
    # row, +-n = row shift.  The concat handles the +-n (row) edges exactly;
    # the +-1 shifts need a where() to undo the wrap across row boundaries.
    xp1 = jnp.where(last_col, x,
                    jnp.concatenate([x[:, 1:], x[:, -1:]], axis=1))   # u[i, j+1|clamp]
    xm1 = jnp.where(first_col, x,
                    jnp.concatenate([x[:, :1], x[:, :-1]], axis=1))   # u[i, j-1|clamp]
    o_ref[0] = 0.5 * (xp1 - xm1)                                      # ux

    xdn = jnp.concatenate([x[:, n:], x[:, -n:]], axis=1)              # u[i+1|clamp, j]
    xup = jnp.concatenate([x[:, :n], x[:, :-n]], axis=1)              # u[i-1|clamp, j]
    o_ref[1] = 0.5 * (xup - xdn)                                      # uy


def _pick_batch_tile(nb, p, *, budget_bytes=16 * 1024 * 1024):
    """Images per grid step (f32 accounting):
       input block 4p (x2 buffers)  ->  8p
       output block 8p (x2 buffers) -> 16p
       ~6 live full-tile temporaries in VMEM -> 24p
    """
    per_img = 48 * p
    cap = max(1, budget_bytes // per_img)
    if nb >= 16:
        cap = min(cap, nb // 2)   # keep >= 2 grid steps (pipelining + 2 TCs on v7x)
    cap = min(cap, nb)
    tb = 1
    for d in range(1, cap + 1):   # largest divisor of nb that fits the budget
        if nb % d == 0:
            tb = d
    return tb


def grad_op(u):
    """u: (Nb, 1, N, N) float32  ->  (Nb, 1, N, N, 2) float32."""
    nb, c, n, n2 = u.shape
    assert c == 1 and n == n2 and n >= 2
    p = n * n
    tb = _pick_batch_tile(nb, p)
    t = nb // tb

    u3 = u.reshape(t, tb, p)                                   # free (contiguous)
    col = (jnp.arange(p, dtype=jnp.int32) % n).reshape(1, p)   # tiny, stays resident

    bytes_accessed = nb * p * u.dtype.itemsize * 3 + col.size * 4  # read u + write 2 planes
    out = pl.pallas_call(
        functools.partial(_gradop_kernel, n=n),
        out_shape=jax.ShapeDtypeStruct((t, 2, tb, p), u.dtype),
        grid=(t,),
        in_specs=[
            pl.BlockSpec((1, p), lambda i: (0, 0)),            # column ids (resident)
            pl.BlockSpec((None, tb, p), lambda i: (i, 0, 0)),  # TB flat images
        ],
        out_specs=pl.BlockSpec((None, 2, tb, p), lambda i: (i, 0, 0, 0)),
        compiler_params=pltpu.CompilerParams(
            dimension_semantics=("parallel",),
            vmem_limit_bytes=48 * 1024 * 1024,
        ),
        cost_estimate=pl.CostEstimate(
            flops=8 * nb * p, transcendentals=0, bytes_accessed=bytes_accessed),
    )(col, u3)                                                 # (T, 2, TB, P)

    # Single accepted transpose into PyTorch's trailing-2 layout (extra ~8 B per
    # output element of HBM traffic).  Channel-first consumers can use `out`
    # directly and skip it.
    g = out.transpose(0, 2, 3, 1)                              # (T, TB, P, 2)
    return g.reshape(nb, 1, n, n, 2)                           # free reshape


def _grad_op_ref(u):
    """Pure-JAX reference mirroring ReplicationPad2d + conv2d semantics."""
    up = jnp.pad(u, ((0, 0), (0, 0), (1, 1), (1, 1)), mode="edge")
    ux = 0.5 * (up[:, :, 1:-1, 2:] - up[:, :, 1:-1, :-2])
    uy = 0.5 * (up[:, :, :-2, 1:-1] - up[:, :, 2:, 1:-1])
    return jnp.stack([ux, uy], axis=-1)


if __name__ == "__main__":
    key = jax.random.PRNGKey(0)
    # (Nb=2, N=16): single-step grid, TB = Nb.
    # (Nb=32, N=28): module-default N, multi-step grid (TB=16, 2 steps).
    for nb, n in [(2, 16), (32, 28)]:
        key, sub = jax.random.split(key)
        u = jax.random.normal(sub, (nb, 1, n, n), dtype=jnp.float32)
        out = jax.block_until_ready(grad_op(u))
        ref = _grad_op_ref(u)
        assert out.shape == (nb, 1, n, n, 2), out.shape
        err = float(jnp.max(jnp.abs(out - ref)))
        assert err <= 1e-6, err
    print("KERNEL_OK")
</pallas_src>

<mosaic_0001>
module attributes {stable_mosaic.version = 11 : i64} {
  func.func @_gradop_kernel(%arg0: i32, %arg1: memref<1x256xi32, #tpu.memory_space<vmem>>, %arg2: memref<1x2x256xf32, #tpu.memory_space<vmem>>, %arg3: memref<1x2x2x256xf32, #tpu.memory_space<vmem>>) attributes {dimension_semantics = [#tpu.dimension_semantics<parallel>], iteration_bounds = array<i64: 1>, scalar_prefetch = 0 : i64, scratch_operands = 0 : i64, tpu.core_type = #tpu.core_type<tc>, window_params = [{pipeline_mode = #tpu.pipeline_mode<synchronous>, transform_indices = @transform_0, window_bounds = array<i64: 1, 256>}, {transform_indices = @transform_1, window_bounds = array<i64: 1, 2, 256>}, {transform_indices = @transform_2, window_bounds = array<i64: 1, 2, 2, 256>}]} {
    %c0 = arith.constant 0 : index
    %c0_0 = arith.constant 0 : index
    %c0_1 = arith.constant 0 : index
    %0 = vector.load %arg2[%c0, %c0_0, %c0_1] : memref<1x2x256xf32, #tpu.memory_space<vmem>>, vector<1x2x256xf32>
    %1 = vector.shape_cast %0 : vector<1x2x256xf32> to vector<2x256xf32>
    %c0_2 = arith.constant 0 : index
    %c0_3 = arith.constant 0 : index
    %2 = vector.load %arg1[%c0_2, %c0_3] : memref<1x256xi32, #tpu.memory_space<vmem>>, vector<1x256xi32>
    %c0_i32 = arith.constant 0 : i32
    %3 = vector.broadcast %c0_i32 : i32 to vector<1x256xi32>
    %4 = arith.cmpi eq, %2, %3 : vector<1x256xi32>
    %c15_i32 = arith.constant 15 : i32
    %5 = vector.broadcast %c15_i32 : i32 to vector<1x256xi32>
    %6 = arith.cmpi eq, %2, %5 : vector<1x256xi32>
    %7 = vector.extract_strided_slice %1 {offsets = [0, 1], sizes = [2, 255], strides = [1, 1]} : vector<2x256xf32> to vector<2x255xf32>
    %8 = vector.extract_strided_slice %1 {offsets = [0, 255], sizes = [2, 1], strides = [1, 1]} : vector<2x256xf32> to vector<2x1xf32>
    %9 = tpu.concatenate %7, %8 in 1 : vector<2x255xf32>, vector<2x1xf32> -> vector<2x256xf32>
    %10 = vector.shape_cast %6 : vector<1x256xi1> to vector<1x256xi1>
    %11 = vector.broadcast %10 : vector<1x256xi1> to vector<2x256xi1>
    %12 = arith.select %11, %1, %9 : vector<2x256xi1>, vector<2x256xf32>
    %13 = vector.extract_strided_slice %1 {offsets = [0, 0], sizes = [2, 1], strides = [1, 1]} : vector<2x256xf32> to vector<2x1xf32>
    %14 = vector.extract_strided_slice %1 {offsets = [0, 0], sizes = [2, 255], strides = [1, 1]} : vector<2x256xf32> to vector<2x255xf32>
    %15 = tpu.concatenate %13, %14 in 1 : vector<2x1xf32>, vector<2x255xf32> -> vector<2x256xf32>
    %16 = vector.shape_cast %4 : vector<1x256xi1> to vector<1x256xi1>
    %17 = vector.broadcast %16 : vector<1x256xi1> to vector<2x256xi1>
    %18 = arith.select %17, %1, %15 : vector<2x256xi1>, vector<2x256xf32>
    %19 = arith.subf %12, %18 : vector<2x256xf32>
    %cst = arith.constant 5.000000e-01 : f32
    %20 = vector.broadcast %cst : f32 to vector<2x256xf32>
    %21 = arith.mulf %20, %19 : vector<2x256xf32>
    %c0_4 = arith.constant 0 : index
    %c0_5 = arith.constant 0 : index
    %c0_6 = arith.constant 0 : index
    %c0_7 = arith.constant 0 : index
    %22 = vector.load %arg3[%c0_4, %c0_5, %c0_6, %c0_7] : memref<1x2x2x256xf32, #tpu.memory_space<vmem>>, vector<1x1x2x256xf32>
    %23 = vector.shape_cast %22 : vector<1x1x2x256xf32> to vector<2x256xf32>
    %24 = vector.shape_cast %21 : vector<2x256xf32> to vector<1x1x2x256xf32>
    tpu.vector_store %arg3[%c0_4, %c0_5, %c0_6, %c0_7], %24 {strides = array<i32>} : memref<1x2x2x256xf32, #tpu.memory_space<vmem>>, vector<1x1x2x256xf32>,
    %25 = vector.extract_strided_slice %1 {offsets = [0, 16], sizes = [2, 240], strides = [1, 1]} : vector<2x256xf32> to vector<2x240xf32>
    %26 = vector.extract_strided_slice %1 {offsets = [0, 240], sizes = [2, 16], strides = [1, 1]} : vector<2x256xf32> to vector<2x16xf32>
    %27 = tpu.concatenate %25, %26 in 1 : vector<2x240xf32>, vector<2x16xf32> -> vector<2x256xf32>
    %28 = vector.extract_strided_slice %1 {offsets = [0, 0], sizes = [2, 16], strides = [1, 1]} : vector<2x256xf32> to vector<2x16xf32>
    %29 = vector.extract_strided_slice %1 {offsets = [0, 0], sizes = [2, 240], strides = [1, 1]} : vector<2x256xf32> to vector<2x240xf32>
    %30 = tpu.concatenate %28, %29 in 1 : vector<2x16xf32>, vector<2x240xf32> -> vector<2x256xf32>
    %31 = arith.subf %30, %27 : vector<2x256xf32>
    %cst_8 = arith.constant 5.000000e-01 : f32
    %32 = vector.broadcast %cst_8 : f32 to vector<2x256xf32>
    %33 = arith.mulf %32, %31 : vector<2x256xf32>
    %c0_9 = arith.constant 0 : index
    %c1 = arith.constant 1 : index
    %c0_10 = arith.constant 0 : index
    %c0_11 = arith.constant 0 : index
    %34 = vector.load %arg3[%c0_9, %c1, %c0_10, %c0_11] : memref<1x2x2x256xf32, #tpu.memory_space<vmem>>, vector<1x1x2x256xf32>
    %35 = vector.shape_cast %34 : vector<1x1x2x256xf32> to vector<2x256xf32>
    %36 = vector.shape_cast %33 : vector<2x256xf32> to vector<1x1x2x256xf32>
    tpu.vector_store %arg3[%c0_9, %c1, %c0_10, %c0_11], %36 {strides = array<i32>} : memref<1x2x2x256xf32, #tpu.memory_space<vmem>>, vector<1x1x2x256xf32>,
    return
  }
  func.func @transform_0(%arg0: i32) -> (i32, i32) {
    %c0_i32 = arith.constant 0 : i32
    %c0_i32_0 = arith.constant 0 : i32
    %c0_i32_1 = arith.constant 0 : i32
    return %c0_i32, %c0_i32_0 : i32, i32
  }
  func.func @transform_1(%arg0: i32) -> (i32, i32, i32) {
    %c0_i32 = arith.constant 0 : i32
    %c0_i32_0 = arith.constant 0 : i32
    %c0_i32_1 = arith.constant 0 : i32
    return %arg0, %c0_i32, %c0_i32_0 : i32, i32, i32
  }
  func.func @transform_2(%arg0: i32) -> (i32, i32, i32, i32) {
    %c0_i32 = arith.constant 0 : i32
    %c0_i32_0 = arith.constant 0 : i32
    %c0_i32_1 = arith.constant 0 : i32
    %c0_i32_2 = arith.constant 0 : i32
    return %arg0, %c0_i32, %c0_i32_0, %c0_i32_1 : i32, i32, i32, i32
  }
}

</mosaic_0001>

<llo_original>
// kernel: tpu_custom_call.1
$region0: #{tpu_custom_call.1}
  #allocation0 [shape = 'u32[]', space=smem, size = 0x4, offset = 0x4, fixed_abs, tag = 'smem constant byte address 0x4 - core index']
  #allocation1 [shape = 'u32[144,128]{1,0:T(1,128)}', space=vmem, size = 0x12000, scoped, tag = 'internal scratch']
  %s0 = inlined_call_operand.hbm [shape: s32[1,256], index: 0, kind: input, shape index: {}]
  %s1 = inlined_call_operand.hbm [shape: f32[1,2,256], index: 1, kind: input, shape index: {}]
  %s2 = inlined_call_operand.hbm [shape: f32[1,2,2,256], index: 2, kind: output, shape index: {}]
  %s3 = sld [smem:[#allocation0]]
  $region26: #{tpu_custom_call.1} parent=0
    _
  %s5 = ssub.s32 1, %s3
  %s6 = scalar_select 0, %s5, %s3
  $region1: #{tpu_custom_call.1} parent=0
    #allocation2 [shape = 'u8[1024]{0}', space=vmem, size = 0x400, scoped, tag = 'input window, operand 0, single buffered']
    #allocation3 [shape = 's32[1]{0}', space=sflag, size = 0x4, scoped, tag = 'scoped memory for tpu_custom_call.1']
    #allocation4 [shape = 's32[1]{0}', space=sflag, size = 0x4, scoped, tag = 'scoped memory for tpu_custom_call.1']
    #allocation5 [shape = 'u8[2048]{0}', space=vmem, size = 0x800, scoped, tag = 'input window, operand 1, single buffered']
    #allocation6 [shape = 's32[1]{0}', space=sflag, size = 0x4, scoped, tag = 'scoped memory for tpu_custom_call.1']
    #allocation7 [shape = 'u8[4096]{0}', space=vmem, size = 0x1000, scoped, tag = 'output window, operand 0, single buffered']
    %7 = vsyncpa [#allocation3], 0
    %8 = vsyncpa [#allocation6], 0
    %9 = vsyncpa [#allocation4], 0
    // Predicated region
    $region2: #{tpu_custom_call.1} parent=1 // pred_check
      _
    $region3: #{tpu_custom_call.1} parent=1 // pred_check_branch
      %11 = sbr.rel (0) target = $region5
    $region4: #{tpu_custom_call.1} parent=1 // pred_region
      %s13 = ssub.s32 32, 32
      %14 = vsyncadd [#allocation3], %s13
      %s16 = sshll.u32 [#allocation2], 4
      %s17 = int_to_ptr.vmem [resolvable:$true] %s16
      %19 = dma.hbm_to_vmem [thread:$0]  %s0, 32, %s17, [#allocation3]
    $region5: #{tpu_custom_call.1} parent=1 // pred_fallthru
      _
    // Predicated region
    $region6: #{tpu_custom_call.1} parent=1 // pred_check
      _
    $region7: #{tpu_custom_call.1} parent=1 // pred_check_branch
      %21 = sbr.rel (0) target = $region9
    $region8: #{tpu_custom_call.1} parent=1 // pred_region
      %s23 = ssub.s32 64, 64
      %24 = vsyncadd [#allocation6], %s23
      %s26 = sshll.u32 [#allocation5], 4
      %s27 = int_to_ptr.vmem [resolvable:$true] %s26
      %29 = dma.hbm_to_vmem [thread:$0]  %s1, 64, %s27, [#allocation6]
    $region9: #{tpu_custom_call.1} parent=1 // pred_fallthru
      _
    // Predicated region
    $region10: #{tpu_custom_call.1} parent=1 // pred_check
      _
    $region11: #{tpu_custom_call.1} parent=1 // pred_check_branch
      %31 = sbr.rel (0) target = $region13
    $region12: #{tpu_custom_call.1} parent=1 // pred_region
      %32 = dma.done [#allocation3], 32
    $region13: #{tpu_custom_call.1} parent=1 // pred_fallthru
      _
    // Predicated region
    $region14: #{tpu_custom_call.1} parent=1 // pred_check
      _
    $region15: #{tpu_custom_call.1} parent=1 // pred_check_branch
      %34 = sbr.rel (0) target = $region17
    $region16: #{tpu_custom_call.1} parent=1 // pred_region
      %35 = dma.done [#allocation6], 64
    $region17: #{tpu_custom_call.1} parent=1 // pred_fallthru
      _
    %v36 = vld [vmem:[#allocation5] sm:$0xf]
    %v37 = vld [vmem:[#allocation2] sm:$0x3]
    %vm38 = vcmp.eq.s32.totalorder %v37, 0
    %vm39 = vcmp.eq.s32.totalorder %v37, 15
    %v42 = vunpack.c.l.s4 1983009808
    %v43 = vunpack.c.0.s8 %v42
    %v44 = vlaneseq
    %v45 = vshrl.u32 %v44, 7
    %v46 = vsub.s32 %v43, %v45
    %v47 = vrot.slane %v36, %v46
    %v48 = vcombine.high %v47, %v47
    %49 = vrot.lane.b32.xlu0 %v47, 127
    %v50 = vpop.permute.xlu0 %49
    %51 = vrot.lane.b32.xlu0 %v48, 127
    %v52 = vpop.permute.xlu0 %51
    %vm53 = vcmask 1039360
    %v54 = vsel %vm53, %v50, %v52
    %v58 = vsel %vm53, %v52, %v48
    %v59 = vsel %vm39, 1, 0
    %v60 = vlaneseq
    %v61 = vshrl.u32 %v60, 7
    %v62 = vsub.s32 0, %v61
    %v63 = vrot.slane %v59, %v62
    %v64 = vlaneseq
    %v65 = vshrl.u32 %v64, 7
    %v66 = vsub.s32 1, %v65
    %v67 = vrot.slane %v59, %v66
    %vm68 = vcmp.eq.s32.totalorder %v63, 1
    %vm69 = vcmp.eq.s32.totalorder %v67, 1
    %v71 = vsel %vm68, %v47, %v54
    %v72 = vsel %vm69, %v48, %v58
    %73 = vrot.lane.b32.xlu0 %v47, 1
    %v74 = vpop.permute.xlu0 %73
    %75 = vrot.lane.b32.xlu0 %v48, 1
    %v76 = vpop.permute.xlu0 %75
    %vm77 = vcmask 7168
    %v78 = vsel %vm77, %v74, %v76
    %v81 = vsel %vm77, %v36, %v74
    %v82 = vsel %vm38, 1, 0
    %v83 = vlaneseq
    %v84 = vshrl.u32 %v83, 7
    %v85 = vsub.s32 0, %v84
    %v86 = vrot.slane %v82, %v85
    %v87 = vlaneseq
    %v88 = vshrl.u32 %v87, 7
    %v89 = vsub.s32 1, %v88
    %v90 = vrot.slane %v82, %v89
    %vm91 = vcmp.eq.s32.totalorder %v86, 1
    %vm92 = vcmp.eq.s32.totalorder %v90, 1
    %v93 = vsel %vm91, %v47, %v81
    %v94 = vsel %vm92, %v48, %v78
    %v95 = vsub.f32 %v71, %v93
    %v96 = vsub.f32 %v72, %v94
    %v97 = vmul.f32 %v95, 0.5
    %v98 = vmul.f32 %v96, 0.5
    %v101 = vcombine.low %v97, %v98
    %v103 = vunpack.c.l.s4 1983009808
    %v104 = vunpack.c.0.s8 %v103
    %v105 = vlaneseq
    %v106 = vshrl.u32 %v105, 7
    %v107 = vsub.s32 %v104, %v106
    %v108 = vrot.slane %v101, %v107
    %110 = vst [vmem:[#allocation7] sm:$0xf] %v108
    %111 = vrot.lane.b32.xlu0 %v47, 112
    %v112 = vpop.permute.xlu0 %111
    %113 = vrot.lane.b32.xlu0 %v48, 112
    %v114 = vpop.permute.xlu0 %113
    %vm115 = vcmask 916480
    %v116 = vsel %vm115, %v112, %v114
    %v119 = vsel %vm115, %v114, %v48
    %120 = vrot.lane.b32.xlu0 %v47, 16
    %v121 = vpop.permute.xlu0 %120
    %122 = vrot.lane.b32.xlu0 %v48, 16
    %v123 = vpop.permute.xlu0 %122
    %vm124 = vcmask 130048
    %v125 = vsel %vm124, %v121, %v123
    %v128 = vsel %vm124, %v36, %v121
    %v129 = vsub.f32 %v128, %v116
    %v130 = vsub.f32 %v125, %v119
    %v131 = vmul.f32 %v129, 0.5
    %v132 = vmul.f32 %v130, 0.5
    %v135 = vcombine.low %v131, %v132
    %v137 = vunpack.c.l.s4 1983009808
    %v138 = vunpack.c.0.s8 %v137
    %v139 = vlaneseq
    %v140 = vshrl.u32 %v139, 7
    %v141 = vsub.s32 %v138, %v140
    %v142 = vrot.slane %v135, %v141
    %s144 = scalar_lea.vmem [#allocation7], 4
    %145 = vst [vmem:[%s144] sm:$0xf] %v142
    // Predicated region
    $region18: #{tpu_custom_call.1} parent=1 // pred_check
      _
    $region19: #{tpu_custom_call.1} parent=1 // pred_check_branch
      %147 = sbr.rel (0) target = $region21
    $region20: #{tpu_custom_call.1} parent=1 // pred_region
      %s149 = ssub.s32 128, 128
      %150 = vsyncadd [#allocation4], %s149
      %s151 = sshll.u32 [#allocation7], 4
      %s152 = int_to_ptr.vmem [resolvable:$true] %s151
      %157 = dma.vmem_to_hbm [thread:$0]  %s152, 128, %s2, [#allocation4], 64, 64, 4
    $region21: #{tpu_custom_call.1} parent=1 // pred_fallthru
      _
    // Predicated region
    $region22: #{tpu_custom_call.1} parent=1 // pred_check
      _
    $region23: #{tpu_custom_call.1} parent=1 // pred_check_branch
      %159 = sbr.rel (0) target = $region25
    $region24: #{tpu_custom_call.1} parent=1 // pred_region
      %160 = dma.done [#allocation4], 128
    $region25: #{tpu_custom_call.1} parent=1 // pred_fallthru
      _
    %161 = vsyncpa [#allocation3], 1
    %162 = vsyncpa [#allocation6], 1
    %163 = vsyncpa [#allocation4], 1

</llo_original>
